<compile_context>
chip_gen: v7x
topology: tpu7x:2x2x1
jax: 0.10.0
libtpu: 0.0.40
codegen_flags: <defaults>
</compile_context>

<pallas_src>
from functools import partial

import jax
import jax.numpy as jnp
from jax.experimental import pallas as pl
from jax.experimental.pallas import tpu as pltpu

PAD = 128  # lane-dense feature padding for every layer's in/out dims


def _mlp3_kernel(x_ref, w_ref, b_ref, o_ref, *, in_features):
    # x_ref: [row_block, in_features]           (last dim == full array dim)
    # w_ref: [3, PAD, PAD]  zero-padded [in,out] weights, VMEM-resident
    # b_ref: [3, 1,  PAD]   zero-padded biases (f32)
    # o_ref: [row_block, PAD]  lane-dense padded output
    x = x_ref[...]
    w0 = w_ref[0, :in_features, :]                                   # static slice, sublane-aligned
    h = jnp.dot(x, w0, preferred_element_type=jnp.float32) + b_ref[0]
    h = jnp.dot(h.astype(w0.dtype), w_ref[1],
                preferred_element_type=jnp.float32) + b_ref[1]
    h = jnp.dot(h.astype(w0.dtype), w_ref[2],
                preferred_element_type=jnp.float32) + b_ref[2]
    o_ref[...] = h.astype(o_ref.dtype)


def pack_params(params, compute_dtype=jnp.float32):
    """One-time layout fix: PyTorch [out,in] weights -> zero-padded [in,out] slabs.

    params = [(W1, b1), (W2, b2), (W3, b3)], W: [out, in], b: [out].
    Returns (w_slab [3, PAD, PAD] in compute_dtype, b_slab [3, 1, PAD] f32).
    Zero padding keeps the fused padded matmuls numerically exact.
    """
    ws, bs = [], []
    for w, b in params:
        out_f, in_f = w.shape
        wp = jnp.zeros((PAD, PAD), compute_dtype).at[:in_f, :out_f].set(
            w.T.astype(compute_dtype))
        bp = jnp.zeros((1, PAD), jnp.float32).at[0, :out_f].set(
            b.astype(jnp.float32))
        ws.append(wp)
        bs.append(bp)
    return jnp.stack(ws), jnp.stack(bs)


def mlp3_forward(x, w_slab, b_slab, *, out_features, row_block=256):
    """x: [N, in_features] -> [N, out_features]; slabs from pack_params (done once)."""
    N, in_features = x.shape
    n_pad = (-N) % row_block
    if n_pad:
        x = jnp.pad(x, ((0, n_pad), (0, 0)))
    n_rows = N + n_pad
    x = x.astype(w_slab.dtype)

    out_padded = pl.pallas_call(
        partial(_mlp3_kernel, in_features=in_features),
        out_shape=jax.ShapeDtypeStruct((n_rows, PAD), jnp.float32),
        grid=(n_rows // row_block,),
        in_specs=[
            pl.BlockSpec((row_block, in_features), lambda i: (i, 0)),
            pl.BlockSpec((3, PAD, PAD), lambda i: (0, 0, 0)),   # VMEM-resident slab
            pl.BlockSpec((3, 1, PAD), lambda i: (0, 0, 0)),     # VMEM-resident biases
        ],
        out_specs=pl.BlockSpec((row_block, PAD), lambda i: (i, 0)),
        compiler_params=pltpu.CompilerParams(
            dimension_semantics=("parallel",)),                 # megacore on v7x
    )(x, w_slab, b_slab)

    return out_padded[:N, :out_features]


def init_linear(key, in_features, out_features):
    """Deterministic init mimicking nn.Linear's default uniform(-1/sqrt(in), 1/sqrt(in))."""
    kw, kb = jax.random.split(key)
    bound = 1.0 / jnp.sqrt(jnp.float32(in_features))
    w = jax.random.uniform(kw, (out_features, in_features), jnp.float32, -bound, bound)
    b = jax.random.uniform(kb, (out_features,), jnp.float32, -bound, bound)
    return w, b


if __name__ == "__main__":
    # topology = [numAttributes, hidden1, hidden2, numClasses]
    topology = (32, 64, 48, 8)
    batch = 512          # many rows per call -> real grid (2 steps of 256 rows)
    row_block = 256

    key = jax.random.PRNGKey(0)
    keys = jax.random.split(key, len(topology))  # 1 for x, 3 for layers

    x = jax.random.normal(keys[0], (batch, topology[0]), jnp.float32)
    params = [init_linear(keys[i + 1], topology[i], topology[i + 1])
              for i in range(len(topology) - 1)]

    # One-time packing (outside the hot path).  For v6e/v7x serving, pass
    # compute_dtype=jnp.bfloat16 here to cut MXU passes ~3x.
    w_slab, b_slab = pack_params(params, compute_dtype=jnp.float32)

    fwd = jax.jit(partial(mlp3_forward,
                          out_features=topology[-1],
                          row_block=row_block))
    out = jax.block_until_ready(fwd(x, w_slab, b_slab))

    # Pure-JAX reference for sanity.
    ref = x
    for w, b in params:
        ref = ref @ w.T + b

    assert out.shape == (batch, topology[-1])
    assert jnp.allclose(out, ref, atol=1e-4, rtol=1e-4)

    # TODO(synk): training path (CrossEntropyLoss + SGD/Adam updates) is host-side
    # PyTorch logic outside Model.forward and is intentionally not ported.

    print("KERNEL_OK")
</pallas_src>

<mosaic_0001>
module attributes {stable_mosaic.version = 11 : i64} {
  func.func @_mlp3_kernel(%arg0: i32, %arg1: memref<256x32xf32, #tpu.memory_space<vmem>>, %arg2: memref<3x128x128xf32, #tpu.memory_space<vmem>>, %arg3: memref<3x1x128xf32, #tpu.memory_space<vmem>>, %arg4: memref<256x128xf32, #tpu.memory_space<vmem>>) attributes {dimension_semantics = [#tpu.dimension_semantics<parallel>], iteration_bounds = array<i64: 2>, scalar_prefetch = 0 : i64, scratch_operands = 0 : i64, tpu.core_type = #tpu.core_type<tc>, window_params = [{transform_indices = @transform_0, window_bounds = array<i64: 256, 32>}, {pipeline_mode = #tpu.pipeline_mode<synchronous>, transform_indices = @transform_1, window_bounds = array<i64: 3, 128, 128>}, {pipeline_mode = #tpu.pipeline_mode<synchronous>, transform_indices = @transform_2, window_bounds = array<i64: 3, 1, 128>}, {transform_indices = @transform_3, window_bounds = array<i64: 256, 128>}]} {
    %c0 = arith.constant 0 : index
    %c0_0 = arith.constant 0 : index
    %0 = vector.load %arg1[%c0, %c0_0] : memref<256x32xf32, #tpu.memory_space<vmem>>, vector<256x32xf32>
    %c0_1 = arith.constant 0 : index
    %c0_2 = arith.constant 0 : index
    %c0_3 = arith.constant 0 : index
    %1 = vector.load %arg2[%c0_1, %c0_2, %c0_3] : memref<3x128x128xf32, #tpu.memory_space<vmem>>, vector<1x32x128xf32>
    %2 = vector.shape_cast %1 : vector<1x32x128xf32> to vector<32x128xf32>
    %cst = arith.constant dense<0.000000e+00> : vector<256x128xf32>
    %3 = tpu.matmul %0, %2, %cst {dimension_numbers = #tpu.dot_dimension_numbers<[1], [0], [0], [1], [0, 0, 1, 1], [], []>} : vector<256x32xf32>, vector<32x128xf32>, vector<256x128xf32> -> vector<256x128xf32>
    %c0_4 = arith.constant 0 : index
    %c0_5 = arith.constant 0 : index
    %c0_6 = arith.constant 0 : index
    %4 = vector.load %arg3[%c0_4, %c0_5, %c0_6] : memref<3x1x128xf32, #tpu.memory_space<vmem>>, vector<1x1x128xf32>
    %5 = vector.shape_cast %4 : vector<1x1x128xf32> to vector<1x128xf32>
    %6 = vector.broadcast %5 : vector<1x128xf32> to vector<256x128xf32>
    %7 = arith.addf %3, %6 : vector<256x128xf32>
    %c1 = arith.constant 1 : index
    %c0_7 = arith.constant 0 : index
    %c0_8 = arith.constant 0 : index
    %8 = vector.load %arg2[%c1, %c0_7, %c0_8] : memref<3x128x128xf32, #tpu.memory_space<vmem>>, vector<1x128x128xf32>
    %9 = vector.shape_cast %8 : vector<1x128x128xf32> to vector<128x128xf32>
    %cst_9 = arith.constant dense<0.000000e+00> : vector<256x128xf32>
    %10 = tpu.matmul %7, %9, %cst_9 {dimension_numbers = #tpu.dot_dimension_numbers<[1], [0], [0], [1], [0, 0, 1, 1], [], []>} : vector<256x128xf32>, vector<128x128xf32>, vector<256x128xf32> -> vector<256x128xf32>
    %c1_10 = arith.constant 1 : index
    %c0_11 = arith.constant 0 : index
    %c0_12 = arith.constant 0 : index
    %11 = vector.load %arg3[%c1_10, %c0_11, %c0_12] : memref<3x1x128xf32, #tpu.memory_space<vmem>>, vector<1x1x128xf32>
    %12 = vector.shape_cast %11 : vector<1x1x128xf32> to vector<1x128xf32>
    %13 = vector.broadcast %12 : vector<1x128xf32> to vector<256x128xf32>
    %14 = arith.addf %10, %13 : vector<256x128xf32>
    %c2 = arith.constant 2 : index
    %c0_13 = arith.constant 0 : index
    %c0_14 = arith.constant 0 : index
    %15 = vector.load %arg2[%c2, %c0_13, %c0_14] : memref<3x128x128xf32, #tpu.memory_space<vmem>>, vector<1x128x128xf32>
    %16 = vector.shape_cast %15 : vector<1x128x128xf32> to vector<128x128xf32>
    %cst_15 = arith.constant dense<0.000000e+00> : vector<256x128xf32>
    %17 = tpu.matmul %14, %16, %cst_15 {dimension_numbers = #tpu.dot_dimension_numbers<[1], [0], [0], [1], [0, 0, 1, 1], [], []>} : vector<256x128xf32>, vector<128x128xf32>, vector<256x128xf32> -> vector<256x128xf32>
    %c2_16 = arith.constant 2 : index
    %c0_17 = arith.constant 0 : index
    %c0_18 = arith.constant 0 : index
    %18 = vector.load %arg3[%c2_16, %c0_17, %c0_18] : memref<3x1x128xf32, #tpu.memory_space<vmem>>, vector<1x1x128xf32>
    %19 = vector.shape_cast %18 : vector<1x1x128xf32> to vector<1x128xf32>
    %20 = vector.broadcast %19 : vector<1x128xf32> to vector<256x128xf32>
    %21 = arith.addf %17, %20 : vector<256x128xf32>
    %c0_19 = arith.constant 0 : index
    %c0_20 = arith.constant 0 : index
    %22 = vector.load %arg4[%c0_19, %c0_20] : memref<256x128xf32, #tpu.memory_space<vmem>>, vector<256x128xf32>
    tpu.vector_store %arg4[%c0_19, %c0_20], %21 {strides = array<i32>} : memref<256x128xf32, #tpu.memory_space<vmem>>, vector<256x128xf32>,
    return
  }
  func.func @transform_0(%arg0: i32) -> (i32, i32) {
    %c0_i32 = arith.constant 0 : i32
    %c0_i32_0 = arith.constant 0 : i32
    return %arg0, %c0_i32 : i32, i32
  }
  func.func @transform_1(%arg0: i32) -> (i32, i32, i32) {
    %c0_i32 = arith.constant 0 : i32
    %c0_i32_0 = arith.constant 0 : i32
    %c0_i32_1 = arith.constant 0 : i32
    %c0_i32_2 = arith.constant 0 : i32
    return %c0_i32, %c0_i32_0, %c0_i32_1 : i32, i32, i32
  }
  func.func @transform_2(%arg0: i32) -> (i32, i32, i32) {
    %c0_i32 = arith.constant 0 : i32
    %c0_i32_0 = arith.constant 0 : i32
    %c0_i32_1 = arith.constant 0 : i32
    %c0_i32_2 = arith.constant 0 : i32
    return %c0_i32, %c0_i32_0, %c0_i32_1 : i32, i32, i32
  }
  func.func @transform_3(%arg0: i32) -> (i32, i32) {
    %c0_i32 = arith.constant 0 : i32
    %c0_i32_0 = arith.constant 0 : i32
    return %arg0, %c0_i32 : i32, i32
  }
}

</mosaic_0001>

<llo_original>
// kernel: mlp3_forward.1
$region0: #{mlp3_forward.1}
  #allocation0 [shape = 'u32[]', space=smem, size = 0x4, offset = 0x4, fixed_abs, tag = 'smem constant byte address 0x4 - core index']
  #allocation1 [shape = 'u32[144,128]{1,0:T(1,128)}', space=vmem, size = 0x12000, scoped, tag = 'internal scratch']
  %s0 = inlined_call_operand.vmem [shape: f32[512,32], index: 0, kind: input, shape index: {}]
  %s1 = inlined_call_operand.vmem [shape: f32[3,128,128], index: 1, kind: input, shape index: {}]
  %s2 = inlined_call_operand.vmem [shape: f32[3,1,128], index: 2, kind: input, shape index: {}]
  %s3 = inlined_call_operand.vmem [shape: f32[512,128], index: 3, kind: output, shape index: {}]
  %s4 = sld [smem:[#allocation0]]
  $region45: #{mlp3_forward.1} parent=0
    _
  %s6 = ssub.s32 1, %s4
  %s7 = scalar_select 0, %s6, %s4
  loop: start=0, step=1, limit=4
  $region2: #{mlp3_forward.1} parent=0 // loop_pre_header
    _
  $region3: #{mlp3_forward.1} parent=0 // loop_header
    %s9 = sphi 0, %s13
    %p10 = scmp.ge.s32.totalorder %s9, 4
    %s19 = sphi 0, %s21
    %s22 = sphi 0, %s19
    %s23 = sphi 0, %s22
    %s39 = sphi 0, %s23
    %s43 = sphi 0, %s43
    %s45 = sphi 0, %s43
    %s46 = sphi 0, %s45
    %s60 = sphi 0, %s46
    %s64 = sphi 0, %s64
    %s66 = sphi 0, %s64
    %s67 = sphi 0, %s66
    %s81 = sphi 0, %s67
    %s87 = sphi 0, %s89
    %s90 = sphi 0, %s87
    %s91 = sphi 0, %s90
    %s107 = sphi 0, %s91
  $region4: #{mlp3_forward.1} parent=0 // loop_header_branch
    %12 = sbr.rel (%p10) target = $region8
  $region5: #{mlp3_forward.1} parent=0 // loop_body
    %s14 = ssub.s32 %s9, 1
    %s15 = ssub.s32 %s9, 2
    %s16 = sadd.s32 %s9, 1
    %s17 = ssub.s32 %s9, %s16
    %p18 = scmp.eq.s32.totalorder %s17, 0
    %s20 = sadd.s32 %s19, 1
    %s21 = scalar_select %p18, %s19, %s20
    %p24 = pneg %p18
    %p25 = scmp.eq.s32.totalorder %s9, 1
    %p26 = por %p24, %p25
    %p27 = scmp.ne.s32.totalorder %s19, %s22
    %p28 = scmp.eq.s32.totalorder %s9, 0
    %p29 = por %p27, %p28
    %p30 = scmp.ne.s32.totalorder %s19, %s22
    %p31 = scmp.eq.s32.totalorder %s14, 1
    %p32 = por %p30, %p31
    %p33 = scmp.ne.s32.totalorder %s22, %s23
    %p34 = scmp.eq.s32.totalorder %s14, 0
    %p35 = por %p33, %p34
    %p36 = scmp.ne.s32.totalorder %s22, %s23
    %p37 = scmp.eq.s32.totalorder %s15, 1
    %p38 = por %p36, %p37
    %p40 = scmp.ne.s32.totalorder %s23, %s39
    %p41 = scmp.eq.s32.totalorder %s15, 0
    %p42 = por %p40, %p41
    %s44 = sadd.s32 %s43, 1
    %p47 = scmp.eq.s32.totalorder %s9, 1
    %p48 = scmp.ne.s32.totalorder %s43, %s45
    %p49 = scmp.eq.s32.totalorder %s9, 0
    %p50 = por %p48, %p49
    %p51 = scmp.ne.s32.totalorder %s43, %s45
    %p52 = scmp.eq.s32.totalorder %s14, 1
    %p53 = por %p51, %p52
    %p54 = scmp.ne.s32.totalorder %s45, %s46
    %p55 = scmp.eq.s32.totalorder %s14, 0
    %p56 = por %p54, %p55
    %p57 = scmp.ne.s32.totalorder %s45, %s46
    %p58 = scmp.eq.s32.totalorder %s15, 1
    %p59 = por %p57, %p58
    %p61 = scmp.ne.s32.totalorder %s46, %s60
    %p62 = scmp.eq.s32.totalorder %s15, 0
    %p63 = por %p61, %p62
    %s65 = sadd.s32 %s64, 1
    %p68 = scmp.eq.s32.totalorder %s9, 1
    %p69 = scmp.ne.s32.totalorder %s64, %s66
    %p70 = scmp.eq.s32.totalorder %s9, 0
    %p71 = por %p69, %p70
    %p72 = scmp.ne.s32.totalorder %s64, %s66
    %p73 = scmp.eq.s32.totalorder %s14, 1
    %p74 = por %p72, %p73
    %p75 = scmp.ne.s32.totalorder %s66, %s67
    %p76 = scmp.eq.s32.totalorder %s14, 0
    %p77 = por %p75, %p76
    %p78 = scmp.ne.s32.totalorder %s66, %s67
    %p79 = scmp.eq.s32.totalorder %s15, 1
    %p80 = por %p78, %p79
    %p82 = scmp.ne.s32.totalorder %s67, %s81
    %p83 = scmp.eq.s32.totalorder %s15, 0
    %p84 = por %p82, %p83
    %s85 = ssub.s32 %s9, %s16
    %p86 = scmp.eq.s32.totalorder %s85, 0
    %s88 = sadd.s32 %s87, 1
    %s89 = scalar_select %p86, %s87, %s88
    %p92 = pneg %p86
    %p93 = scmp.eq.s32.totalorder %s9, 1
    %p94 = por %p92, %p93
    %p95 = scmp.ne.s32.totalorder %s87, %s90
    %p96 = scmp.eq.s32.totalorder %s9, 0
    %p97 = por %p95, %p96
    %p98 = scmp.ne.s32.totalorder %s87, %s90
    %p99 = scmp.eq.s32.totalorder %s14, 1
    %p100 = por %p98, %p99
    %p101 = scmp.ne.s32.totalorder %s90, %s91
    %p102 = scmp.eq.s32.totalorder %s14, 0
    %p103 = por %p101, %p102
    %p104 = scmp.ne.s32.totalorder %s90, %s91
    %p105 = scmp.eq.s32.totalorder %s15, 1
    %p106 = por %p104, %p105
    %p108 = scmp.ne.s32.totalorder %s91, %s107
    %p109 = scmp.eq.s32.totalorder %s15, 0
    %p110 = por %p108, %p109
    %p111 = scmp.le.s32.totalorder 1, %s9
    %p112 = scmp.lt.s32.totalorder %s9, 3
    %p113 = pnand %p111, %p112
    %p114 = pneg %p113
    // Predicated region
    $region9: #{mlp3_forward.1} parent=5 // pred_check
      _
    $region10: #{mlp3_forward.1} parent=5 // pred_check_branch
      %116 = sbr.rel (%p113) target = $region12
    $region11: #{mlp3_forward.1} parent=5 // pred_region
      %s117 = ssub.s32 %s9, 1
      // Predicated region
      $region13: #{mlp3_forward.1} parent=11 // pred_check
        %p118 = pneg %p56
      $region14: #{mlp3_forward.1} parent=11 // pred_check_branch
        %120 = sbr.rel (%p118) target = $region16
      $region15: #{mlp3_forward.1} parent=11 // pred_region
        _
      $region16: #{mlp3_forward.1} parent=11 // pred_fallthru
        _
      // Predicated region
      $region17: #{mlp3_forward.1} parent=11 // pred_check
        %p121 = pneg %p77
      $region18: #{mlp3_forward.1} parent=11 // pred_check_branch
        %123 = sbr.rel (%p121) target = $region20
      $region19: #{mlp3_forward.1} parent=11 // pred_region
        _
      $region20: #{mlp3_forward.1} parent=11 // pred_fallthru
        _
    $region12: #{mlp3_forward.1} parent=5 // pred_fallthru
      _
    %p124 = scmp.lt.s32.totalorder %s9, 2
    // Predicated region
    $region21: #{mlp3_forward.1} parent=5 // pred_check
      %p125 = pneg %p124
    $region22: #{mlp3_forward.1} parent=5 // pred_check_branch
      %127 = sbr.rel (%p125) target = $region24
    $region23: #{mlp3_forward.1} parent=5 // pred_region
      // Predicated region
      $region25: #{mlp3_forward.1} parent=23 // pred_check
        %p128 = pneg %p29
      $region26: #{mlp3_forward.1} parent=23 // pred_check_branch
        %130 = sbr.rel (%p128) target = $region28
      $region27: #{mlp3_forward.1} parent=23 // pred_region
        %s131 = smul.u32 32, %s9
        %p132 = scmp.lt.s32.totalorder %s131, 63
        %s133 = scalar_select %p132, %s131, 63
        %s134 = smul.addr %s133, 8
        %s135 = scalar_lea.vmem %s0, %s134
        %s136 = smul.u32 32, %s9
      $region28: #{mlp3_forward.1} parent=23 // pred_fallthru
        _
    $region24: #{mlp3_forward.1} parent=5 // pred_fallthru
      _
    %p137 = scmp.le.s32.totalorder 1, %s9
    %p138 = scmp.lt.s32.totalorder %s9, 3
    %p139 = pnand %p137, %p138
    %p140 = pneg %p139
    // Predicated region
    $region29: #{mlp3_forward.1} parent=5 // pred_check
      _
    $region30: #{mlp3_forward.1} parent=5 // pred_check_branch
      %142 = sbr.rel (%p139) target = $region32
    $region31: #{mlp3_forward.1} parent=5 // pred_region
      %s143 = ssub.s32 %s9, 1
      %s144 = smul.u32 32, %s14
      %p145 = scmp.lt.s32.totalorder %s144, 63
      %s146 = scalar_select %p145, %s144, 63
      %s147 = smul.addr %s146, 8
      %s148 = scalar_lea.vmem %s0, %s147
      %p149 = pneg %p35
      %p150 = pneg %p32
      %p151 = pneg %p56
      %p152 = pneg %p53
      %p153 = pneg %p77
      %p154 = pneg %p74
      %p155 = pneg %p103
      %p156 = pneg %p100
      %s157 = smul.u32 32, %s14
      %p158 = scmp.lt.s32.totalorder %s157, 63
      %s159 = scalar_select %p158, %s157, 63
      %s160 = smul.addr %s159, 8
      %s161 = scalar_lea.vmem %s3, %s160
      %s162 = smul.u32 32, %s14
      %p163 = scmp.lt.s32.totalorder %s162, 63
      %s164 = scalar_select %p163, %s162, 63
      %s165 = smul.addr %s164, 8
      %s166 = scalar_lea.vmem %s0, %s165
      %s167 = smul.u32 32, %s14
      %s168 = smul.u32 32, %s14
      %p169 = scmp.lt.s32.totalorder %s168, 63
      %s170 = scalar_select %p169, %s168, 63
      %s171 = smul.addr %s170, 8
      %s172 = scalar_lea.vmem %s3, %s171
      %s173 = smul.u32 32, %s14
      %v174 = vld [vmem:[%s166] sm:$0xff]
      %v175 = vld [vmem:[%s166 + $0x8] sm:$0xff]
      %v176 = vld [vmem:[%s166 + $0x10] sm:$0xff]
      %v177 = vld [vmem:[%s166 + $0x18] sm:$0xff]
      %v178 = vld [vmem:[%s166 + $0x20] sm:$0xff]
      %v179 = vld [vmem:[%s166 + $0x28] sm:$0xff]
      %v180 = vld [vmem:[%s166 + $0x30] sm:$0xff]
      %v181 = vld [vmem:[%s166 + $0x38] sm:$0xff]
      %v182 = vld [vmem:[%s166 + $0x40] sm:$0xff]
      %v183 = vld [vmem:[%s166 + $0x48] sm:$0xff]
      %v184 = vld [vmem:[%s166 + $0x50] sm:$0xff]
      %v185 = vld [vmem:[%s166 + $0x58] sm:$0xff]
      %v186 = vld [vmem:[%s166 + $0x60] sm:$0xff]
      %v187 = vld [vmem:[%s166 + $0x68] sm:$0xff]
      %v188 = vld [vmem:[%s166 + $0x70] sm:$0xff]
      %v189 = vld [vmem:[%s166 + $0x78] sm:$0xff]
      %v190 = vld [vmem:[%s166 + $0x80] sm:$0xff]
      %v191 = vld [vmem:[%s166 + $0x88] sm:$0xff]
      %v192 = vld [vmem:[%s166 + $0x90] sm:$0xff]
      %v193 = vld [vmem:[%s166 + $0x98] sm:$0xff]
      %v194 = vld [vmem:[%s166 + $0xa0] sm:$0xff]
      %v195 = vld [vmem:[%s166 + $0xa8] sm:$0xff]
      %v196 = vld [vmem:[%s166 + $0xb0] sm:$0xff]
      %v197 = vld [vmem:[%s166 + $0xb8] sm:$0xff]
      %v198 = vld [vmem:[%s166 + $0xc0] sm:$0xff]
      %v199 = vld [vmem:[%s166 + $0xc8] sm:$0xff]
      %v200 = vld [vmem:[%s166 + $0xd0] sm:$0xff]
      %v201 = vld [vmem:[%s166 + $0xd8] sm:$0xff]
      %v202 = vld [vmem:[%s166 + $0xe0] sm:$0xff]
      %v203 = vld [vmem:[%s166 + $0xe8] sm:$0xff]
      %v204 = vld [vmem:[%s166 + $0xf0] sm:$0xff]
      %v205 = vld [vmem:[%s166 + $0xf8] sm:$0xff]
      %v206 = vld [vmem:[%s1] sm:$0xff]
      %v207 = vld [vmem:[%s1 + $0x8] sm:$0xff]
      %v208 = vld [vmem:[%s1 + $0x10] sm:$0xff]
      %v209 = vld [vmem:[%s1 + $0x18] sm:$0xff]
      %v210 = vld [vmem:[%s2] sm:$0x1]
      %v212 = vlaneseq
      %v213 = vshrl.u32 %v212, 7
      %v214 = vsub.s32 0, %v213
      %v215 = vrot.slane %v210, %v214
      %vm217 = vcmask 261120
      %v219 = vsel %vm217, %v174, 0
      %v222 = vsel %vm217, %v175, 0
      %v225 = vsel %vm217, %v176, 0
      %v228 = vsel %vm217, %v177, 0
      %v231 = vsel %vm217, %v178, 0
      %v234 = vsel %vm217, %v179, 0
      %v237 = vsel %vm217, %v180, 0
      %v240 = vsel %vm217, %v181, 0
      %v243 = vsel %vm217, %v182, 0
      %v246 = vsel %vm217, %v183, 0
      %v249 = vsel %vm217, %v184, 0
      %v252 = vsel %vm217, %v185, 0
      %v255 = vsel %vm217, %v186, 0
      %v258 = vsel %vm217, %v187, 0
      %v261 = vsel %vm217, %v188, 0
      %v264 = vsel %vm217, %v189, 0
      %v267 = vsel %vm217, %v190, 0
      %v270 = vsel %vm217, %v191, 0
      %v273 = vsel %vm217, %v192, 0
      %v276 = vsel %vm217, %v193, 0
      %v279 = vsel %vm217, %v194, 0
      %v282 = vsel %vm217, %v195, 0
      %v285 = vsel %vm217, %v196, 0
      %v288 = vsel %vm217, %v197, 0
      %v291 = vsel %vm217, %v198, 0
      %v294 = vsel %vm217, %v199, 0
      %v297 = vsel %vm217, %v200, 0
      %v300 = vsel %vm217, %v201, 0
      %v303 = vsel %vm217, %v202, 0
      %v306 = vsel %vm217, %v203, 0
      %v309 = vsel %vm217, %v204, 0
      %v312 = vsel %vm217, %v205, 0
      %314 = vmatprep.subr.mxu0 0.0
      %315 = vmatpush1.msra.mxu0 %v206
      %316 = vmatprep.subr.mxu0 0.0
      %317 = vmatpush1.msra.mxu0 %v207
      %318 = vmatprep.subr.mxu0 0.0
      %319 = vmatpush1.msra.mxu0 %v208
      %320 = vmatprep.subr.mxu0 0.0
      %321 = vmatpush1.msra.mxu0 %v209
      %322 = vmatprep.subr.mxu0 0.0
      %323 = vmatpush1.msra.mxu0 0.0
      %324 = vmatprep.subr.mxu0 0.0
      %325 = vmatpush1.msra.mxu0 0.0
      %326 = vmatprep.subr.mxu0 0.0
      %327 = vmatpush1.msra.mxu0 0.0
      %328 = vmatprep.subr.mxu0 0.0
      %329 = vmatpush1.msra.mxu0 0.0
      %330 = vmatprep.subr.mxu0 0.0
      %331 = vmatpush1.msra.mxu0 0.0
      %332 = vmatprep.subr.mxu0 0.0
      %333 = vmatpush1.msra.mxu0 0.0
      %334 = vmatprep.subr.mxu0 0.0
      %335 = vmatpush1.msra.mxu0 0.0
      %336 = vmatprep.subr.mxu0 0.0
      %337 = vmatpush1.msra.mxu0 0.0
      %338 = vmatprep.subr.mxu0 0.0
      %339 = vmatpush1.msra.mxu0 0.0
      %340 = vmatprep.subr.mxu0 0.0
      %341 = vmatpush1.msra.mxu0 0.0
      %342 = vmatprep.subr.mxu0 0.0
      %343 = vmatpush1.msra.mxu0 0.0
      %344 = vmatprep.subr.mxu0 0.0
      %345 = vmatpush1.msra.mxu0 0.0
      %346 = vmatprep.subr.mxu0 0.0
      %347 = vmatpush1.msra.mxu0 0.0
      %348 = vmatprep.subr.mxu0 0.0
      %349 = vmatpush1.msra.mxu0 0.0
      %350 = vmatprep.subr.mxu0 0.0
      %351 = vmatpush1.msra.mxu0 0.0
      %352 = vmatprep.subr.mxu0 0.0
      %353 = vmatpush1.msra.mxu0 0.0
      %354 = vmatprep.subr.mxu0 0.0
      %355 = vmatpush1.msra.mxu0 0.0
      %356 = vmatprep.subr.mxu0 0.0
      %357 = vmatpush1.msra.mxu0 0.0
      %358 = vmatprep.subr.mxu0 0.0
      %359 = vmatpush1.msra.mxu0 0.0
      %360 = vmatprep.subr.mxu0 0.0
      %361 = vmatpush1.msra.mxu0 0.0
      %362 = vmatprep.subr.mxu0 0.0
      %363 = vmatpush1.msra.mxu0 0.0
      %364 = vmatprep.subr.mxu0 0.0
      %365 = vmatpush1.msra.mxu0 0.0
      %366 = vmatprep.subr.mxu0 0.0
      %367 = vmatpush1.msra.mxu0 0.0
      %368 = vmatprep.subr.mxu0 0.0
      %369 = vmatpush1.msra.mxu0 0.0
      %370 = vmatprep.subr.mxu0 0.0
      %371 = vmatpush1.msra.mxu0 0.0
      %372 = vmatprep.subr.mxu0 0.0
      %373 = vmatpush1.msra.mxu0 0.0
      %374 = vmatprep.subr.mxu0 0.0
      %375 = vmatpush1.msra.mxu0 0.0
      %376 = vmatprep.subr.mxu0 0.0
      %377 = vmatpush1.msra.mxu0 0.0
      %378 = vmatprep.mubr.f32.mxu0 0.0
      %379 = vmatmul.mubr.f32.gmra.mrb[0].mxu0 %v219
      %v380 = vpop.f32.mrb[0].mxu0
      %v381 = vadd.f32 %v215, %v380
      %v382 = vpop.f32.mrb[0].mxu0
      %383 = vmatprep.mubr.f32.mxu0 0.0
      %384 = vmatmul.mubr.f32.gmra.mrb[0].mxu0 %v222
      %v385 = vpop.f32.mrb[0].mxu0
      %v386 = vadd.f32 %v215, %v385
      %v387 = vpop.f32.mrb[0].mxu0
      %388 = vmatprep.mubr.f32.mxu0 0.0
      %389 = vmatmul.mubr.f32.gmra.mrb[0].mxu0 %v225
      %v390 = vpop.f32.mrb[0].mxu0
      %v391 = vadd.f32 %v215, %v390
      %v392 = vpop.f32.mrb[0].mxu0
      %393 = vmatprep.mubr.f32.mxu0 0.0
      %394 = vmatmul.mubr.f32.gmra.mrb[0].mxu0 %v228
      %v395 = vpop.f32.mrb[0].mxu0
      %v396 = vadd.f32 %v215, %v395
      %v397 = vpop.f32.mrb[0].mxu0
      %398 = vmatprep.mubr.f32.mxu0 0.0
      %399 = vmatmul.mubr.f32.gmra.mrb[0].mxu0 %v231
      %v400 = vpop.f32.mrb[0].mxu0
      %v401 = vadd.f32 %v215, %v400
      %v402 = vpop.f32.mrb[0].mxu0
      %403 = vmatprep.mubr.f32.mxu0 0.0
      %404 = vmatmul.mubr.f32.gmra.mrb[0].mxu0 %v234
      %v405 = vpop.f32.mrb[0].mxu0
      %v406 = vadd.f32 %v215, %v405
      %v407 = vpop.f32.mrb[0].mxu0
      %408 = vmatprep.mubr.f32.mxu0 0.0
      %409 = vmatmul.mubr.f32.gmra.mrb[0].mxu0 %v237
      %v410 = vpop.f32.mrb[0].mxu0
      %v411 = vadd.f32 %v215, %v410
      %v412 = vpop.f32.mrb[0].mxu0
      %413 = vmatprep.mubr.f32.mxu0 0.0
      %414 = vmatmul.mubr.f32.gmra.mrb[0].mxu0 %v240
      %v415 = vpop.f32.mrb[0].mxu0
      %v416 = vadd.f32 %v215, %v415
      %v417 = vpop.f32.mrb[0].mxu0
      %418 = vmatprep.mubr.f32.mxu0 0.0
      %419 = vmatmul.mubr.f32.gmra.mrb[0].mxu0 %v243
      %v420 = vpop.f32.mrb[0].mxu0
      %v421 = vadd.f32 %v215, %v420
      %v422 = vpop.f32.mrb[0].mxu0
      %423 = vmatprep.mubr.f32.mxu0 0.0
      %424 = vmatmul.mubr.f32.gmra.mrb[0].mxu0 %v246
      %v425 = vpop.f32.mrb[0].mxu0
      %v426 = vadd.f32 %v215, %v425
      %v427 = vpop.f32.mrb[0].mxu0
      %428 = vmatprep.mubr.f32.mxu0 0.0
      %429 = vmatmul.mubr.f32.gmra.mrb[0].mxu0 %v249
      %v430 = vpop.f32.mrb[0].mxu0
      %v431 = vadd.f32 %v215, %v430
      %v432 = vpop.f32.mrb[0].mxu0
      %433 = vmatprep.mubr.f32.mxu0 0.0
      %434 = vmatmul.mubr.f32.gmra.mrb[0].mxu0 %v252
      %v435 = vpop.f32.mrb[0].mxu0
      %v436 = vadd.f32 %v215, %v435
      %v437 = vpop.f32.mrb[0].mxu0
      %438 = vmatprep.mubr.f32.mxu0 0.0
      %439 = vmatmul.mubr.f32.gmra.mrb[0].mxu0 %v255
      %v440 = vpop.f32.mrb[0].mxu0
      %v441 = vadd.f32 %v215, %v440
      %v442 = vpop.f32.mrb[0].mxu0
      %443 = vmatprep.mubr.f32.mxu0 0.0
      %444 = vmatmul.mubr.f32.gmra.mrb[0].mxu0 %v258
      %v445 = vpop.f32.mrb[0].mxu0
      %v446 = vadd.f32 %v215, %v445
      %v447 = vpop.f32.mrb[0].mxu0
      %448 = vmatprep.mubr.f32.mxu0 0.0
      %449 = vmatmul.mubr.f32.gmra.mrb[0].mxu0 %v261
      %v450 = vpop.f32.mrb[0].mxu0
      %v451 = vadd.f32 %v215, %v450
      %v452 = vpop.f32.mrb[0].mxu0
      %453 = vmatprep.mubr.f32.mxu0 0.0
      %454 = vmatmul.mubr.f32.gmra.mrb[0].mxu0 %v264
      %v455 = vpop.f32.mrb[0].mxu0
      %v456 = vadd.f32 %v215, %v455
      %v457 = vpop.f32.mrb[0].mxu0
      %458 = vmatprep.mubr.f32.mxu0 0.0
      %459 = vmatmul.mubr.f32.gmra.mrb[0].mxu0 %v267
      %v460 = vpop.f32.mrb[0].mxu0
      %v461 = vadd.f32 %v215, %v460
      %v462 = vpop.f32.mrb[0].mxu0
      %463 = vmatprep.mubr.f32.mxu0 0.0
      %464 = vmatmul.mubr.f32.gmra.mrb[0].mxu0 %v270
      %v465 = vpop.f32.mrb[0].mxu0
      %v466 = vadd.f32 %v215, %v465
      %v467 = vpop.f32.mrb[0].mxu0
      %468 = vmatprep.mubr.f32.mxu0 0.0
      %469 = vmatmul.mubr.f32.gmra.mrb[0].mxu0 %v273
      %v470 = vpop.f32.mrb[0].mxu0
      %v471 = vadd.f32 %v215, %v470
      %v472 = vpop.f32.mrb[0].mxu0
      %473 = vmatprep.mubr.f32.mxu0 0.0
      %474 = vmatmul.mubr.f32.gmra.mrb[0].mxu0 %v276
      %v475 = vpop.f32.mrb[0].mxu0
      %v476 = vadd.f32 %v215, %v475
      %v477 = vpop.f32.mrb[0].mxu0
      %478 = vmatprep.mubr.f32.mxu0 0.0
      %479 = vmatmul.mubr.f32.gmra.mrb[0].mxu0 %v279
      %v480 = vpop.f32.mrb[0].mxu0
      %v481 = vadd.f32 %v215, %v480
      %v482 = vpop.f32.mrb[0].mxu0
      %483 = vmatprep.mubr.f32.mxu0 0.0
      %484 = vmatmul.mubr.f32.gmra.mrb[0].mxu0 %v282
      %v485 = vpop.f32.mrb[0].mxu0
      %v486 = vadd.f32 %v215, %v485
      %v487 = vpop.f32.mrb[0].mxu0
      %488 = vmatprep.mubr.f32.mxu0 0.0
      %489 = vmatmul.mubr.f32.gmra.mrb[0].mxu0 %v285
      %v490 = vpop.f32.mrb[0].mxu0
      %v491 = vadd.f32 %v215, %v490
      %v492 = vpop.f32.mrb[0].mxu0
      %493 = vmatprep.mubr.f32.mxu0 0.0
      %494 = vmatmul.mubr.f32.gmra.mrb[0].mxu0 %v288
      %v495 = vpop.f32.mrb[0].mxu0
      %v496 = vadd.f32 %v215, %v495
      %v497 = vpop.f32.mrb[0].mxu0
      %498 = vmatprep.mubr.f32.mxu0 0.0
      %499 = vmatmul.mubr.f32.gmra.mrb[0].mxu0 %v291
      %v500 = vpop.f32.mrb[0].mxu0
      %v501 = vadd.f32 %v215, %v500
      %v502 = vpop.f32.mrb[0].mxu0
      %503 = vmatprep.mubr.f32.mxu0 0.0
      %504 = vmatmul.mubr.f32.gmra.mrb[0].mxu0 %v294
      %v505 = vpop.f32.mrb[0].mxu0
      %v506 = vadd.f32 %v215, %v505
      %v507 = vpop.f32.mrb[0].mxu0
      %508 = vmatprep.mubr.f32.mxu0 0.0
      %509 = vmatmul.mubr.f32.gmra.mrb[0].mxu0 %v297
      %v510 = vpop.f32.mrb[0].mxu0
      %v511 = vadd.f32 %v215, %v510
      %v512 = vpop.f32.mrb[0].mxu0
      %513 = vmatprep.mubr.f32.mxu0 0.0
      %514 = vmatmul.mubr.f32.gmra.mrb[0].mxu0 %v300
      %v515 = vpop.f32.mrb[0].mxu0
      %v516 = vadd.f32 %v215, %v515
      %v517 = vpop.f32.mrb[0].mxu0
      %518 = vmatprep.mubr.f32.mxu0 0.0
      %519 = vmatmul.mubr.f32.gmra.mrb[0].mxu0 %v303
      %v520 = vpop.f32.mrb[0].mxu0
      %v521 = vadd.f32 %v215, %v520
      %v522 = vpop.f32.mrb[0].mxu0
      %523 = vmatprep.mubr.f32.mxu0 0.0
      %524 = vmatmul.mubr.f32.gmra.mrb[0].mxu0 %v306
      %v525 = vpop.f32.mrb[0].mxu0
      %v526 = vadd.f32 %v215, %v525
      %v527 = vpop.f32.mrb[0].mxu0
      %528 = vmatprep.mubr.f32.mxu0 0.0
      %529 = vmatmul.mubr.f32.gmra.mrb[0].mxu0 %v309
      %v530 = vpop.f32.mrb[0].mxu0
      %v531 = vadd.f32 %v215, %v530
      %v532 = vpop.f32.mrb[0].mxu0
      %533 = vmatprep.mubr.f32.mxu0 0.0
      %534 = vmatmul.mubr.f32.gmra.mrb[0].mxu0 %v312
      %v535 = vpop.f32.mrb[0].mxu0
      %v536 = vadd.f32 %v215, %v535
      %v537 = vpop.f32.mrb[0].mxu0
      %538 = vdwg.mxu0
      %s539 = scalar_lea.vmem %s1, 128
      %v540 = vld [vmem:[%s539] sm:$0xff]
      %v541 = vld [vmem:[%s539 + $0x8] sm:$0xff]
      %v542 = vld [vmem:[%s539 + $0x10] sm:$0xff]
      %v543 = vld [vmem:[%s539 + $0x18] sm:$0xff]
      %v544 = vld [vmem:[%s539 + $0x20] sm:$0xff]
      %v545 = vld [vmem:[%s539 + $0x28] sm:$0xff]
      %v546 = vld [vmem:[%s539 + $0x30] sm:$0xff]
      %v547 = vld [vmem:[%s539 + $0x38] sm:$0xff]
      %v548 = vld [vmem:[%s539 + $0x40] sm:$0xff]
      %v549 = vld [vmem:[%s539 + $0x48] sm:$0xff]
      %v550 = vld [vmem:[%s539 + $0x50] sm:$0xff]
      %v551 = vld [vmem:[%s539 + $0x58] sm:$0xff]
      %v552 = vld [vmem:[%s539 + $0x60] sm:$0xff]
      %v553 = vld [vmem:[%s539 + $0x68] sm:$0xff]
      %v554 = vld [vmem:[%s539 + $0x70] sm:$0xff]
      %v555 = vld [vmem:[%s539 + $0x78] sm:$0xff]
      %s556 = scalar_lea.vmem %s2, 1
      %v557 = vld [vmem:[%s556] sm:$0x1]
      %v559 = vlaneseq
      %v560 = vshrl.u32 %v559, 7
      %v561 = vsub.s32 0, %v560
      %v562 = vrot.slane %v557, %v561
      %564 = vmatprep.subr.mxu0 0.0
      %565 = vmatpush1.msra.mxu0 %v540
      %566 = vmatprep.subr.mxu0 0.0
      %567 = vmatpush1.msra.mxu0 %v541
      %568 = vmatprep.subr.mxu0 0.0
      %569 = vmatpush1.msra.mxu0 %v542
      %570 = vmatprep.subr.mxu0 0.0
      %571 = vmatpush1.msra.mxu0 %v543
      %572 = vmatprep.subr.mxu0 0.0
      %573 = vmatpush1.msra.mxu0 %v544
      %574 = vmatprep.subr.mxu0 0.0
      %575 = vmatpush1.msra.mxu0 %v545
      %576 = vmatprep.subr.mxu0 0.0
      %577 = vmatpush1.msra.mxu0 %v546
      %578 = vmatprep.subr.mxu0 0.0
      %579 = vmatpush1.msra.mxu0 %v547
      %580 = vmatprep.subr.mxu0 0.0
      %581 = vmatpush1.msra.mxu0 %v548
      %582 = vmatprep.subr.mxu0 0.0
      %583 = vmatpush1.msra.mxu0 %v549
      %584 = vmatprep.subr.mxu0 0.0
      %585 = vmatpush1.msra.mxu0 %v550
      %586 = vmatprep.subr.mxu0 0.0
      %587 = vmatpush1.msra.mxu0 %v551
      %588 = vmatprep.subr.mxu0 0.0
      %589 = vmatpush1.msra.mxu0 %v552
      %590 = vmatprep.subr.mxu0 0.0
      %591 = vmatpush1.msra.mxu0 %v553
      %592 = vmatprep.subr.mxu0 0.0
      %593 = vmatpush1.msra.mxu0 %v554
      %594 = vmatprep.subr.mxu0 0.0
      %595 = vmatpush1.msra.mxu0 %v555
      %596 = vmatprep.subr.mxu0 0.0
      %597 = vmatpush1.msra.mxu0 0.0
      %598 = vmatprep.subr.mxu0 0.0
      %599 = vmatpush1.msra.mxu0 0.0
      %600 = vmatprep.subr.mxu0 0.0
      %601 = vmatpush1.msra.mxu0 0.0
      %602 = vmatprep.subr.mxu0 0.0
      %603 = vmatpush1.msra.mxu0 0.0
      %604 = vmatprep.subr.mxu0 0.0
      %605 = vmatpush1.msra.mxu0 0.0
      %606 = vmatprep.subr.mxu0 0.0
      %607 = vmatpush1.msra.mxu0 0.0
      %608 = vmatprep.subr.mxu0 0.0
      %609 = vmatpush1.msra.mxu0 0.0
      %610 = vmatprep.subr.mxu0 0.0
      %611 = vmatpush1.msra.mxu0 0.0
      %612 = vmatprep.subr.mxu0 0.0
      %613 = vmatpush1.msra.mxu0 0.0
      %614 = vmatprep.subr.mxu0 0.0
      %615 = vmatpush1.msra.mxu0 0.0
      %616 = vmatprep.subr.mxu0 0.0
      %617 = vmatpush1.msra.mxu0 0.0
      %618 = vmatprep.subr.mxu0 0.0
      %619 = vmatpush1.msra.mxu0 0.0
      %620 = vmatprep.subr.mxu0 0.0
      %621 = vmatpush1.msra.mxu0 0.0
      %622 = vmatprep.subr.mxu0 0.0
      %623 = vmatpush1.msra.mxu0 0.0
      %624 = vmatprep.subr.mxu0 0.0
      %625 = vmatpush1.msra.mxu0 0.0
      %626 = vmatprep.subr.mxu0 0.0
      %627 = vmatpush1.msra.mxu0 0.0
      %628 = vmatprep.mubr.f32.mxu0 0.0
      %629 = vmatmul.mubr.f32.gmra.mrb[0].mxu0 %v381
      %v630 = vpop.f32.mrb[0].mxu0
      %v631 = vadd.f32 %v562, %v630
      %v632 = vpop.f32.mrb[0].mxu0
      %633 = vmatprep.mubr.f32.mxu0 0.0
      %634 = vmatmul.mubr.f32.gmra.mrb[0].mxu0 %v386
      %v635 = vpop.f32.mrb[0].mxu0
      %v636 = vadd.f32 %v562, %v635
      %v637 = vpop.f32.mrb[0].mxu0
      %638 = vmatprep.mubr.f32.mxu0 0.0
      %639 = vmatmul.mubr.f32.gmra.mrb[0].mxu0 %v391
      %v640 = vpop.f32.mrb[0].mxu0
      %v641 = vadd.f32 %v562, %v640
      %v642 = vpop.f32.mrb[0].mxu0
      %643 = vmatprep.mubr.f32.mxu0 0.0
      %644 = vmatmul.mubr.f32.gmra.mrb[0].mxu0 %v396
      %v645 = vpop.f32.mrb[0].mxu0
      %v646 = vadd.f32 %v562, %v645
      %v647 = vpop.f32.mrb[0].mxu0
      %648 = vmatprep.mubr.f32.mxu0 0.0
      %649 = vmatmul.mubr.f32.gmra.mrb[0].mxu0 %v401
      %v650 = vpop.f32.mrb[0].mxu0
      %v651 = vadd.f32 %v562, %v650
      %v652 = vpop.f32.mrb[0].mxu0
      %653 = vmatprep.mubr.f32.mxu0 0.0
      %654 = vmatmul.mubr.f32.gmra.mrb[0].mxu0 %v406
      %v655 = vpop.f32.mrb[0].mxu0
      %v656 = vadd.f32 %v562, %v655
      %v657 = vpop.f32.mrb[0].mxu0
      %658 = vmatprep.mubr.f32.mxu0 0.0
      %659 = vmatmul.mubr.f32.gmra.mrb[0].mxu0 %v411
      %v660 = vpop.f32.mrb[0].mxu0
      %v661 = vadd.f32 %v562, %v660
      %v662 = vpop.f32.mrb[0].mxu0
      %663 = vmatprep.mubr.f32.mxu0 0.0
      %664 = vmatmul.mubr.f32.gmra.mrb[0].mxu0 %v416
      %v665 = vpop.f32.mrb[0].mxu0
      %v666 = vadd.f32 %v562, %v665
      %v667 = vpop.f32.mrb[0].mxu0
      %668 = vmatprep.mubr.f32.mxu0 0.0
      %669 = vmatmul.mubr.f32.gmra.mrb[0].mxu0 %v421
      %v670 = vpop.f32.mrb[0].mxu0
      %v671 = vadd.f32 %v562, %v670
      %v672 = vpop.f32.mrb[0].mxu0
      %673 = vmatprep.mubr.f32.mxu0 0.0
      %674 = vmatmul.mubr.f32.gmra.mrb[0].mxu0 %v426
      %v675 = vpop.f32.mrb[0].mxu0
      %v676 = vadd.f32 %v562, %v675
      %v677 = vpop.f32.mrb[0].mxu0
      %678 = vmatprep.mubr.f32.mxu0 0.0
      %679 = vmatmul.mubr.f32.gmra.mrb[0].mxu0 %v431
      %v680 = vpop.f32.mrb[0].mxu0
      %v681 = vadd.f32 %v562, %v680
      %v682 = vpop.f32.mrb[0].mxu0
      %683 = vmatprep.mubr.f32.mxu0 0.0
      %684 = vmatmul.mubr.f32.gmra.mrb[0].mxu0 %v436
      %v685 = vpop.f32.mrb[0].mxu0
      %v686 = vadd.f32 %v562, %v685
      %v687 = vpop.f32.mrb[0].mxu0
      %688 = vmatprep.mubr.f32.mxu0 0.0
      %689 = vmatmul.mubr.f32.gmra.mrb[0].mxu0 %v441
      %v690 = vpop.f32.mrb[0].mxu0
      %v691 = vadd.f32 %v562, %v690
      %v692 = vpop.f32.mrb[0].mxu0
      %693 = vmatprep.mubr.f32.mxu0 0.0
      %694 = vmatmul.mubr.f32.gmra.mrb[0].mxu0 %v446
      %v695 = vpop.f32.mrb[0].mxu0
      %v696 = vadd.f32 %v562, %v695
      %v697 = vpop.f32.mrb[0].mxu0
      %698 = vmatprep.mubr.f32.mxu0 0.0
      %699 = vmatmul.mubr.f32.gmra.mrb[0].mxu0 %v451
      %v700 = vpop.f32.mrb[0].mxu0
      %v701 = vadd.f32 %v562, %v700
      %v702 = vpop.f32.mrb[0].mxu0
      %703 = vmatprep.mubr.f32.mxu0 0.0
      %704 = vmatmul.mubr.f32.gmra.mrb[0].mxu0 %v456
      %v705 = vpop.f32.mrb[0].mxu0
      %v706 = vadd.f32 %v562, %v705
      %v707 = vpop.f32.mrb[0].mxu0
      %708 = vmatprep.mubr.f32.mxu0 0.0
      %709 = vmatmul.mubr.f32.gmra.mrb[0].mxu0 %v461
      %v710 = vpop.f32.mrb[0].mxu0
      %v711 = vadd.f32 %v562, %v710
      %v712 = vpop.f32.mrb[0].mxu0
      %713 = vmatprep.mubr.f32.mxu0 0.0
      %714 = vmatmul.mubr.f32.gmra.mrb[0].mxu0 %v466
      %v715 = vpop.f32.mrb[0].mxu0
      %v716 = vadd.f32 %v562, %v715
      %v717 = vpop.f32.mrb[0].mxu0
      %718 = vmatprep.mubr.f32.mxu0 0.0
      %719 = vmatmul.mubr.f32.gmra.mrb[0].mxu0 %v471
      %v720 = vpop.f32.mrb[0].mxu0
      %v721 = vadd.f32 %v562, %v720
      %v722 = vpop.f32.mrb[0].mxu0
      %723 = vmatprep.mubr.f32.mxu0 0.0
      %724 = vmatmul.mubr.f32.gmra.mrb[0].mxu0 %v476
      %v725 = vpop.f32.mrb[0].mxu0
      %v726 = vadd.f32 %v562, %v725
      %v727 = vpop.f32.mrb[0].mxu0
      %728 = vmatprep.mubr.f32.mxu0 0.0
      %729 = vmatmul.mubr.f32.gmra.mrb[0].mxu0 %v481
      %v730 = vpop.f32.mrb[0].mxu0
      %v731 = vadd.f32 %v562, %v730
      %v732 = vpop.f32.mrb[0].mxu0
      %733 = vmatprep.mubr.f32.mxu0 0.0
      %734 = vmatmul.mubr.f32.gmra.mrb[0].mxu0 %v486
      %v735 = vpop.f32.mrb[0].mxu0
      %v736 = vadd.f32 %v562, %v735
      %v737 = vpop.f32.mrb[0].mxu0
      %738 = vmatprep.mubr.f32.mxu0 0.0
      %739 = vmatmul.mubr.f32.gmra.mrb[0].mxu0 %v491
      %v740 = vpop.f32.mrb[0].mxu0
      %v741 = vadd.f32 %v562, %v740
      %v742 = vpop.f32.mrb[0].mxu0
      %743 = vmatprep.mubr.f32.mxu0 0.0
      %744 = vmatmul.mubr.f32.gmra.mrb[0].mxu0 %v496
      %v745 = vpop.f32.mrb[0].mxu0
      %v746 = vadd.f32 %v562, %v745
      %v747 = vpop.f32.mrb[0].mxu0
      %748 = vmatprep.mubr.f32.mxu0 0.0
      %749 = vmatmul.mubr.f32.gmra.mrb[0].mxu0 %v501
      %v750 = vpop.f32.mrb[0].mxu0
      %v751 = vadd.f32 %v562, %v750
      %v752 = vpop.f32.mrb[0].mxu0
      %753 = vmatprep.mubr.f32.mxu0 0.0
      %754 = vmatmul.mubr.f32.gmra.mrb[0].mxu0 %v506
      %v755 = vpop.f32.mrb[0].mxu0
      %v756 = vadd.f32 %v562, %v755
      %v757 = vpop.f32.mrb[0].mxu0
      %758 = vmatprep.mubr.f32.mxu0 0.0
      %759 = vmatmul.mubr.f32.gmra.mrb[0].mxu0 %v511
      %v760 = vpop.f32.mrb[0].mxu0
      %v761 = vadd.f32 %v562, %v760
      %v762 = vpop.f32.mrb[0].mxu0
      %763 = vmatprep.mubr.f32.mxu0 0.0
      %764 = vmatmul.mubr.f32.gmra.mrb[0].mxu0 %v516
      %v765 = vpop.f32.mrb[0].mxu0
      %v766 = vadd.f32 %v562, %v765
      %v767 = vpop.f32.mrb[0].mxu0
      %768 = vmatprep.mubr.f32.mxu0 0.0
      %769 = vmatmul.mubr.f32.gmra.mrb[0].mxu0 %v521
      %v770 = vpop.f32.mrb[0].mxu0
      %v771 = vadd.f32 %v562, %v770
      %v772 = vpop.f32.mrb[0].mxu0
      %773 = vmatprep.mubr.f32.mxu0 0.0
      %774 = vmatmul.mubr.f32.gmra.mrb[0].mxu0 %v526
      %v775 = vpop.f32.mrb[0].mxu0
      %v776 = vadd.f32 %v562, %v775
      %v777 = vpop.f32.mrb[0].mxu0
      %778 = vmatprep.mubr.f32.mxu0 0.0
      %779 = vmatmul.mubr.f32.gmra.mrb[0].mxu0 %v531
      %v780 = vpop.f32.mrb[0].mxu0
      %v781 = vadd.f32 %v562, %v780
      %v782 = vpop.f32.mrb[0].mxu0
      %783 = vmatprep.mubr.f32.mxu0 0.0
      %784 = vmatmul.mubr.f32.gmra.mrb[0].mxu0 %v536
      %v785 = vpop.f32.mrb[0].mxu0
      %v786 = vadd.f32 %v562, %v785
      %v787 = vpop.f32.mrb[0].mxu0
      %788 = vdwg.mxu0
      %s789 = scalar_lea.vmem %s1, 256
      %v790 = vld [vmem:[%s789] sm:$0xff]
      %v791 = vld [vmem:[%s789 + $0x8] sm:$0xff]
      %v792 = vld [vmem:[%s789 + $0x10] sm:$0xff]
      %v793 = vld [vmem:[%s789 + $0x18] sm:$0xff]
      %v794 = vld [vmem:[%s789 + $0x20] sm:$0xff]
      %v795 = vld [vmem:[%s789 + $0x28] sm:$0xff]
      %v796 = vld [vmem:[%s789 + $0x30] sm:$0xff]
      %v797 = vld [vmem:[%s789 + $0x38] sm:$0xff]
      %v798 = vld [vmem:[%s789 + $0x40] sm:$0xff]
      %v799 = vld [vmem:[%s789 + $0x48] sm:$0xff]
      %v800 = vld [vmem:[%s789 + $0x50] sm:$0xff]
      %v801 = vld [vmem:[%s789 + $0x58] sm:$0xff]
      %v802 = vld [vmem:[%s789 + $0x60] sm:$0xff]
      %v803 = vld [vmem:[%s789 + $0x68] sm:$0xff]
      %v804 = vld [vmem:[%s789 + $0x70] sm:$0xff]
      %v805 = vld [vmem:[%s789 + $0x78] sm:$0xff]
      %s806 = scalar_lea.vmem %s2, 2
      %v807 = vld [vmem:[%s806] sm:$0x1]
      %v809 = vlaneseq
      %v810 = vshrl.u32 %v809, 7
      %v811 = vsub.s32 0, %v810
      %v812 = vrot.slane %v807, %v811
      %814 = vmatprep.subr.mxu0 0.0
      %815 = vmatpush1.msra.mxu0 %v790
      %816 = vmatprep.subr.mxu0 0.0
      %817 = vmatpush1.msra.mxu0 %v791
      %818 = vmatprep.subr.mxu0 0.0
      %819 = vmatpush1.msra.mxu0 %v792
      %820 = vmatprep.subr.mxu0 0.0
      %821 = vmatpush1.msra.mxu0 %v793
      %822 = vmatprep.subr.mxu0 0.0
      %823 = vmatpush1.msra.mxu0 %v794
      %824 = vmatprep.subr.mxu0 0.0
      %825 = vmatpush1.msra.mxu0 %v795
      %826 = vmatprep.subr.mxu0 0.0
      %827 = vmatpush1.msra.mxu0 %v796
      %828 = vmatprep.subr.mxu0 0.0
      %829 = vmatpush1.msra.mxu0 %v797
      %830 = vmatprep.subr.mxu0 0.0
      %831 = vmatpush1.msra.mxu0 %v798
      %832 = vmatprep.subr.mxu0 0.0
      %833 = vmatpush1.msra.mxu0 %v799
      %834 = vmatprep.subr.mxu0 0.0
      %835 = vmatpush1.msra.mxu0 %v800
      %836 = vmatprep.subr.mxu0 0.0
      %837 = vmatpush1.msra.mxu0 %v801
      %838 = vmatprep.subr.mxu0 0.0
      %839 = vmatpush1.msra.mxu0 %v802
      %840 = vmatprep.subr.mxu0 0.0
      %841 = vmatpush1.msra.mxu0 %v803
      %842 = vmatprep.subr.mxu0 0.0
      %843 = vmatpush1.msra.mxu0 %v804
      %844 = vmatprep.subr.mxu0 0.0
      %845 = vmatpush1.msra.mxu0 %v805
      %846 = vmatprep.subr.mxu0 0.0
      %847 = vmatpush1.msra.mxu0 0.0
      %848 = vmatprep.subr.mxu0 0.0
      %849 = vmatpush1.msra.mxu0 0.0
      %850 = vmatprep.subr.mxu0 0.0
      %851 = vmatpush1.msra.mxu0 0.0
      %852 = vmatprep.subr.mxu0 0.0
      %853 = vmatpush1.msra.mxu0 0.0
      %854 = vmatprep.subr.mxu0 0.0
      %855 = vmatpush1.msra.mxu0 0.0
      %856 = vmatprep.subr.mxu0 0.0
      %857 = vmatpush1.msra.mxu0 0.0
      %858 = vmatprep.subr.mxu0 0.0
      %859 = vmatpush1.msra.mxu0 0.0
      %860 = vmatprep.subr.mxu0 0.0
      %861 = vmatpush1.msra.mxu0 0.0
      %862 = vmatprep.subr.mxu0 0.0
      %863 = vmatpush1.msra.mxu0 0.0
      %864 = vmatprep.subr.mxu0 0.0
      %865 = vmatpush1.msra.mxu0 0.0
      %866 = vmatprep.subr.mxu0 0.0
      %867 = vmatpush1.msra.mxu0 0.0
      %868 = vmatprep.subr.mxu0 0.0
      %869 = vmatpush1.msra.mxu0 0.0
      %870 = vmatprep.subr.mxu0 0.0
      %871 = vmatpush1.msra.mxu0 0.0
      %872 = vmatprep.subr.mxu0 0.0
      %873 = vmatpush1.msra.mxu0 0.0
      %874 = vmatprep.subr.mxu0 0.0
      %875 = vmatpush1.msra.mxu0 0.0
      %876 = vmatprep.subr.mxu0 0.0
      %877 = vmatpush1.msra.mxu0 0.0
      %878 = vmatprep.mubr.f32.mxu0 0.0
      %879 = vmatmul.mubr.f32.gmra.mrb[0].mxu0 %v631
      %v880 = vpop.f32.mrb[0].mxu0
      %v881 = vadd.f32 %v812, %v880
      %v882 = vpop.f32.mrb[0].mxu0
      %883 = vmatprep.mubr.f32.mxu0 0.0
      %884 = vmatmul.mubr.f32.gmra.mrb[0].mxu0 %v636
      %v885 = vpop.f32.mrb[0].mxu0
      %v886 = vadd.f32 %v812, %v885
      %v887 = vpop.f32.mrb[0].mxu0
      %888 = vmatprep.mubr.f32.mxu0 0.0
      %889 = vmatmul.mubr.f32.gmra.mrb[0].mxu0 %v641
      %v890 = vpop.f32.mrb[0].mxu0
      %v891 = vadd.f32 %v812, %v890
      %v892 = vpop.f32.mrb[0].mxu0
      %893 = vmatprep.mubr.f32.mxu0 0.0
      %894 = vmatmul.mubr.f32.gmra.mrb[0].mxu0 %v646
      %v895 = vpop.f32.mrb[0].mxu0
      %v896 = vadd.f32 %v812, %v895
      %v897 = vpop.f32.mrb[0].mxu0
      %898 = vmatprep.mubr.f32.mxu0 0.0
      %899 = vmatmul.mubr.f32.gmra.mrb[0].mxu0 %v651
      %v900 = vpop.f32.mrb[0].mxu0
      %v901 = vadd.f32 %v812, %v900
      %v902 = vpop.f32.mrb[0].mxu0
      %903 = vmatprep.mubr.f32.mxu0 0.0
      %904 = vmatmul.mubr.f32.gmra.mrb[0].mxu0 %v656
      %v905 = vpop.f32.mrb[0].mxu0
      %v906 = vadd.f32 %v812, %v905
      %v907 = vpop.f32.mrb[0].mxu0
      %908 = vmatprep.mubr.f32.mxu0 0.0
      %909 = vmatmul.mubr.f32.gmra.mrb[0].mxu0 %v661
      %v910 = vpop.f32.mrb[0].mxu0
      %v911 = vadd.f32 %v812, %v910
      %v912 = vpop.f32.mrb[0].mxu0
      %913 = vmatprep.mubr.f32.mxu0 0.0
      %914 = vmatmul.mubr.f32.gmra.mrb[0].mxu0 %v666
      %v915 = vpop.f32.mrb[0].mxu0
      %v916 = vadd.f32 %v812, %v915
      %v917 = vpop.f32.mrb[0].mxu0
      %918 = vmatprep.mubr.f32.mxu0 0.0
      %919 = vmatmul.mubr.f32.gmra.mrb[0].mxu0 %v671
      %v920 = vpop.f32.mrb[0].mxu0
      %v921 = vadd.f32 %v812, %v920
      %v922 = vpop.f32.mrb[0].mxu0
      %923 = vmatprep.mubr.f32.mxu0 0.0
      %924 = vmatmul.mubr.f32.gmra.mrb[0].mxu0 %v676
      %v925 = vpop.f32.mrb[0].mxu0
      %v926 = vadd.f32 %v812, %v925
      %v927 = vpop.f32.mrb[0].mxu0
      %928 = vmatprep.mubr.f32.mxu0 0.0
      %929 = vmatmul.mubr.f32.gmra.mrb[0].mxu0 %v681
      %v930 = vpop.f32.mrb[0].mxu0
      %v931 = vadd.f32 %v812, %v930
      %v932 = vpop.f32.mrb[0].mxu0
      %933 = vmatprep.mubr.f32.mxu0 0.0
      %934 = vmatmul.mubr.f32.gmra.mrb[0].mxu0 %v686
      %v935 = vpop.f32.mrb[0].mxu0
      %v936 = vadd.f32 %v812, %v935
      %v937 = vpop.f32.mrb[0].mxu0
      %938 = vmatprep.mubr.f32.mxu0 0.0
      %939 = vmatmul.mubr.f32.gmra.mrb[0].mxu0 %v691
      %v940 = vpop.f32.mrb[0].mxu0
      %v941 = vadd.f32 %v812, %v940
      %v942 = vpop.f32.mrb[0].mxu0
      %943 = vmatprep.mubr.f32.mxu0 0.0
      %944 = vmatmul.mubr.f32.gmra.mrb[0].mxu0 %v696
      %v945 = vpop.f32.mrb[0].mxu0
      %v946 = vadd.f32 %v812, %v945
      %v947 = vpop.f32.mrb[0].mxu0
      %948 = vmatprep.mubr.f32.mxu0 0.0
      %949 = vmatmul.mubr.f32.gmra.mrb[0].mxu0 %v701
      %v950 = vpop.f32.mrb[0].mxu0
      %v951 = vadd.f32 %v812, %v950
      %v952 = vpop.f32.mrb[0].mxu0
      %953 = vmatprep.mubr.f32.mxu0 0.0
      %954 = vmatmul.mubr.f32.gmra.mrb[0].mxu0 %v706
      %v955 = vpop.f32.mrb[0].mxu0
      %v956 = vadd.f32 %v812, %v955
      %v957 = vpop.f32.mrb[0].mxu0
      %958 = vmatprep.mubr.f32.mxu0 0.0
      %959 = vmatmul.mubr.f32.gmra.mrb[0].mxu0 %v711
      %v960 = vpop.f32.mrb[0].mxu0
      %v961 = vadd.f32 %v812, %v960
      %v962 = vpop.f32.mrb[0].mxu0
      %963 = vmatprep.mubr.f32.mxu0 0.0
      %964 = vmatmul.mubr.f32.gmra.mrb[0].mxu0 %v716
      %v965 = vpop.f32.mrb[0].mxu0
      %v966 = vadd.f32 %v812, %v965
      %v967 = vpop.f32.mrb[0].mxu0
      %968 = vmatprep.mubr.f32.mxu0 0.0
      %969 = vmatmul.mubr.f32.gmra.mrb[0].mxu0 %v721
      %v970 = vpop.f32.mrb[0].mxu0
      %v971 = vadd.f32 %v812, %v970
      %v972 = vpop.f32.mrb[0].mxu0
      %973 = vmatprep.mubr.f32.mxu0 0.0
      %974 = vmatmul.mubr.f32.gmra.mrb[0].mxu0 %v726
      %v975 = vpop.f32.mrb[0].mxu0
      %v976 = vadd.f32 %v812, %v975
      %v977 = vpop.f32.mrb[0].mxu0
      %978 = vmatprep.mubr.f32.mxu0 0.0
      %979 = vmatmul.mubr.f32.gmra.mrb[0].mxu0 %v731
      %v980 = vpop.f32.mrb[0].mxu0
      %v981 = vadd.f32 %v812, %v980
      %v982 = vpop.f32.mrb[0].mxu0
      %983 = vmatprep.mubr.f32.mxu0 0.0
      %984 = vmatmul.mubr.f32.gmra.mrb[0].mxu0 %v736
      %v985 = vpop.f32.mrb[0].mxu0
      %v986 = vadd.f32 %v812, %v985
      %v987 = vpop.f32.mrb[0].mxu0
      %988 = vmatprep.mubr.f32.mxu0 0.0
      %989 = vmatmul.mubr.f32.gmra.mrb[0].mxu0 %v741
      %v990 = vpop.f32.mrb[0].mxu0
      %v991 = vadd.f32 %v812, %v990
      %v992 = vpop.f32.mrb[0].mxu0
      %993 = vmatprep.mubr.f32.mxu0 0.0
      %994 = vmatmul.mubr.f32.gmra.mrb[0].mxu0 %v746
      %v995 = vpop.f32.mrb[0].mxu0
      %v996 = vadd.f32 %v812, %v995
      %v997 = vpop.f32.mrb[0].mxu0
      %998 = vmatprep.mubr.f32.mxu0 0.0
      %999 = vmatmul.mubr.f32.gmra.mrb[0].mxu0 %v751
      %v1000 = vpop.f32.mrb[0].mxu0
      %v1001 = vadd.f32 %v812, %v1000
      %v1002 = vpop.f32.mrb[0].mxu0
      %1003 = vmatprep.mubr.f32.mxu0 0.0
      %1004 = vmatmul.mubr.f32.gmra.mrb[0].mxu0 %v756
      %v1005 = vpop.f32.mrb[0].mxu0
      %v1006 = vadd.f32 %v812, %v1005
      %v1007 = vpop.f32.mrb[0].mxu0
      %1008 = vmatprep.mubr.f32.mxu0 0.0
      %1009 = vmatmul.mubr.f32.gmra.mrb[0].mxu0 %v761
      %v1010 = vpop.f32.mrb[0].mxu0
      %v1011 = vadd.f32 %v812, %v1010
      %v1012 = vpop.f32.mrb[0].mxu0
      %1013 = vmatprep.mubr.f32.mxu0 0.0
      %1014 = vmatmul.mubr.f32.gmra.mrb[0].mxu0 %v766
      %v1015 = vpop.f32.mrb[0].mxu0
      %v1016 = vadd.f32 %v812, %v1015
      %v1017 = vpop.f32.mrb[0].mxu0
      %1018 = vmatprep.mubr.f32.mxu0 0.0
      %1019 = vmatmul.mubr.f32.gmra.mrb[0].mxu0 %v771
      %v1020 = vpop.f32.mrb[0].mxu0
      %v1021 = vadd.f32 %v812, %v1020
      %v1022 = vpop.f32.mrb[0].mxu0
      %1023 = vmatprep.mubr.f32.mxu0 0.0
      %1024 = vmatmul.mubr.f32.gmra.mrb[0].mxu0 %v776
      %v1025 = vpop.f32.mrb[0].mxu0
      %v1026 = vadd.f32 %v812, %v1025
      %v1027 = vpop.f32.mrb[0].mxu0
      %1028 = vmatprep.mubr.f32.mxu0 0.0
      %1029 = vmatmul.mubr.f32.gmra.mrb[0].mxu0 %v781
      %v1030 = vpop.f32.mrb[0].mxu0
      %v1031 = vadd.f32 %v812, %v1030
      %v1032 = vpop.f32.mrb[0].mxu0
      %1033 = vmatprep.mubr.f32.mxu0 0.0
      %1034 = vmatmul.mubr.f32.gmra.mrb[0].mxu0 %v786
      %v1035 = vpop.f32.mrb[0].mxu0
      %v1036 = vadd.f32 %v812, %v1035
      %v1037 = vpop.f32.mrb[0].mxu0
      %1038 = vdwg.mxu0
      %1039 = vst [vmem:[%s172] sm:$0xff] %v881
      %1040 = vst [vmem:[%s172 + $0x8] sm:$0xff] %v886
      %1041 = vst [vmem:[%s172 + $0x10] sm:$0xff] %v891
      %1042 = vst [vmem:[%s172 + $0x18] sm:$0xff] %v896
      %1043 = vst [vmem:[%s172 + $0x20] sm:$0xff] %v901
      %1044 = vst [vmem:[%s172 + $0x28] sm:$0xff] %v906
      %1045 = vst [vmem:[%s172 + $0x30] sm:$0xff] %v911
      %1046 = vst [vmem:[%s172 + $0x38] sm:$0xff] %v916
      %1047 = vst [vmem:[%s172 + $0x40] sm:$0xff] %v921
      %1048 = vst [vmem:[%s172 + $0x48] sm:$0xff] %v926
      %1049 = vst [vmem:[%s172 + $0x50] sm:$0xff] %v931
      %1050 = vst [vmem:[%s172 + $0x58] sm:$0xff] %v936
      %1051 = vst [vmem:[%s172 + $0x60] sm:$0xff] %v941
      %1052 = vst [vmem:[%s172 + $0x68] sm:$0xff] %v946
      %1053 = vst [vmem:[%s172 + $0x70] sm:$0xff] %v951
      %1054 = vst [vmem:[%s172 + $0x78] sm:$0xff] %v956
      %1055 = vst [vmem:[%s172 + $0x80] sm:$0xff] %v961
      %1056 = vst [vmem:[%s172 + $0x88] sm:$0xff] %v966
      %1057 = vst [vmem:[%s172 + $0x90] sm:$0xff] %v971
      %1058 = vst [vmem:[%s172 + $0x98] sm:$0xff] %v976
      %1059 = vst [vmem:[%s172 + $0xa0] sm:$0xff] %v981
      %1060 = vst [vmem:[%s172 + $0xa8] sm:$0xff] %v986
      %1061 = vst [vmem:[%s172 + $0xb0] sm:$0xff] %v991
      %1062 = vst [vmem:[%s172 + $0xb8] sm:$0xff] %v996
      %1063 = vst [vmem:[%s172 + $0xc0] sm:$0xff] %v1001
      %1064 = vst [vmem:[%s172 + $0xc8] sm:$0xff] %v1006
      %1065 = vst [vmem:[%s172 + $0xd0] sm:$0xff] %v1011
      %1066 = vst [vmem:[%s172 + $0xd8] sm:$0xff] %v1016
      %1067 = vst [vmem:[%s172 + $0xe0] sm:$0xff] %v1021
      %1068 = vst [vmem:[%s172 + $0xe8] sm:$0xff] %v1026
      %1069 = vst [vmem:[%s172 + $0xf0] sm:$0xff] %v1031
      %1070 = vst [vmem:[%s172 + $0xf8] sm:$0xff] %v1036
      %s1071 = smul.u32 32, %s14
      %p1072 = scmp.lt.s32.totalorder %s1071, 63
      %s1073 = scalar_select %p1072, %s1071, 63
      %s1074 = smul.addr %s1073, 8
      %s1075 = scalar_lea.vmem %s3, %s1074
      // Predicated region
      $region33: #{mlp3_forward.1} parent=31 // pred_check
        %p1076 = pneg %p100
      $region34: #{mlp3_forward.1} parent=31 // pred_check_branch
        %1078 = sbr.rel (%p1076) target = $region36
      $region35: #{mlp3_forward.1} parent=31 // pred_region
        %s1079 = smul.u32 32, %s14
      $region36: #{mlp3_forward.1} parent=31 // pred_fallthru
        _
    $region32: #{mlp3_forward.1} parent=5 // pred_fallthru
      _
    %p1080 = scmp.le.s32.totalorder 2, %s9
    // Predicated region
    $region37: #{mlp3_forward.1} parent=5 // pred_check
      %p1081 = pneg %p1080
    $region38: #{mlp3_forward.1} parent=5 // pred_check_branch
      %1083 = sbr.rel (%p1081) target = $region40
    $region39: #{mlp3_forward.1} parent=5 // pred_region
      %s1084 = ssub.s32 %s9, 2
      // Predicated region
      $region41: #{mlp3_forward.1} parent=39 // pred_check
        %p1085 = pneg %p106
      $region42: #{mlp3_forward.1} parent=39 // pred_check_branch
        %1087 = sbr.rel (%p1085) target = $region44
      $region43: #{mlp3_forward.1} parent=39 // pred_region
        %s1088 = smul.u32 32, %s15
        %p1089 = scmp.lt.s32.totalorder %s1088, 63
        %s1090 = scalar_select %p1089, %s1088, 63
        %s1091 = smul.addr %s1090, 8
        %s1092 = scalar_lea.vmem %s3, %s1091
      $region44: #{mlp3_forward.1} parent=39 // pred_fallthru
        _
    $region40: #{mlp3_forward.1} parent=5 // pred_fallthru
      _
  $region6: #{mlp3_forward.1} parent=0 // loop_footer
    %s13 = sadd.s32 1, %s9
  $region7: #{mlp3_forward.1} parent=0 // loop_footer_branch
    %8 = sbr.rel target = $region3
  $region8: #{mlp3_forward.1} parent=0 // loop_exit
    _

</llo_original>
